<compile_context>
chip_gen: v6e
topology: v6e:2x2x1
jax: 0.10.0
libtpu: 0.0.40
codegen_flags: <defaults>
</compile_context>

<pallas_src>
import jax
import jax.numpy as jnp
from jax.experimental import pallas as pl
from jax.experimental.pallas import tpu as pltpu

LN_EPS = 1e-12
_LANES = 128
_SUBLANES = 8


def _round_up(x, m):
    return ((x + m - 1) // m) * m


def _head_kernel(x_ref, w1_ref, b1_ref, gamma_ref, beta_ref, w2_ref, b2_ref,
                 out_ref):
    # MXU matmuls in bf16 with f32 accumulation; elementwise math in f32.
    x = x_ref[...].astype(jnp.bfloat16)                      # (tm, H)

    # transform.dense : H -> H
    h = jnp.dot(x, w1_ref[...],
                preferred_element_type=jnp.float32) + b1_ref[...]

    # GELU (exact / erf form, matching torch.nn.functional.gelu default).
    # TODO(synk): switch to tanh-approx (EUP slot) only if bundle analysis
    # shows VALU saturating before the MXU.
    h = 0.5 * h * (1.0 + jax.lax.erf(h * (1.0 / jnp.sqrt(2.0))))

    # transform.LayerNorm over the last dim (eps = 1e-12, BERT convention).
    mean = jnp.mean(h, axis=-1, keepdims=True)
    cent = h - mean
    var = jnp.mean(cent * cent, axis=-1, keepdims=True)
    h = cent * jax.lax.rsqrt(var + LN_EPS)
    h = h * gamma_ref[...] + beta_ref[...]

    # decoder : H -> V (bf16 LHS keeps the MXU at its native bf16 rate).
    out = jnp.dot(h.astype(jnp.bfloat16), w2_ref[...],
                  preferred_element_type=jnp.float32) + b2_ref[...]
    out_ref[...] = out.astype(out_ref.dtype)


def bert_visual_prediction_head(x, params, *, tm=256,
                                vmem_limit_bytes=64 * 1024 * 1024):
    """x: (B, S, H) -> v_logits: (B, S, V)."""
    B, S, H = x.shape
    V = params["w2"].shape[1]
    N = B * S

    # Row tile: large by default (MXU utilization + amortized per-step
    # overhead), clamped so tiny inputs don't pad absurdly; always a multiple
    # of 8 sublanes.
    tm_eff = _round_up(min(tm, _round_up(N, _SUBLANES)), _SUBLANES)
    Np = _round_up(N, tm_eff)

    # Lane-align the output feature dim so stores are unmasked/lane-dense.
    Vp = _round_up(V, _LANES)

    x2 = jnp.pad(x.reshape(N, H), ((0, Np - N), (0, 0)))

    # Weights to bf16 (halves DMA/VMEM bytes, native MXU rate); small vectors
    # stay f32 and are added after the f32 accumulation.
    w1 = params["w1"].astype(jnp.bfloat16)
    w2 = jnp.pad(params["w2"], ((0, 0), (0, Vp - V))).astype(jnp.bfloat16)
    b1 = params["b1"].astype(jnp.float32)
    b2 = jnp.pad(params["b2"].astype(jnp.float32), ((0, 0), (0, Vp - V)))
    gamma = params["gamma"].astype(jnp.float32)
    beta = params["beta"].astype(jnp.float32)

    full = lambda i: (0, 0)   # weights: same (whole) block for every grid step

    out2 = pl.pallas_call(
        _head_kernel,
        out_shape=jax.ShapeDtypeStruct((Np, Vp), x.dtype),
        grid_spec=pltpu.PrefetchScalarGridSpec(
            num_scalar_prefetch=0,
            grid=(pl.cdiv(Np, tm_eff),),
            in_specs=[
                pl.BlockSpec((tm_eff, H), lambda i: (i, 0)),   # x rows
                pl.BlockSpec((H, H), full),                    # W1 (bf16)
                pl.BlockSpec((1, H), full),                    # b1
                pl.BlockSpec((1, H), full),                    # LN gamma
                pl.BlockSpec((1, H), full),                    # LN beta
                pl.BlockSpec((H, Vp), full),                   # W2 (bf16)
                pl.BlockSpec((1, Vp), full),                   # b2
            ],
            out_specs=pl.BlockSpec((tm_eff, Vp), lambda i: (i, 0)),
        ),
        compiler_params=pltpu.CompilerParams(
            dimension_semantics=("parallel",),
            vmem_limit_bytes=vmem_limit_bytes),
    )(x2, w1, b1, gamma, beta, w2, b2)

    return out2[:N, :V].reshape(B, S, V)


def init_params(key, hidden_size, v_target_size):
    k1, k2 = jax.random.split(key)
    scale = 1.0 / jnp.sqrt(hidden_size)
    return {
        # transform.dense: Linear(H, H)
        "w1": jax.random.uniform(k1, (hidden_size, hidden_size),
                                 jnp.float32, -scale, scale),
        "b1": jnp.zeros((1, hidden_size), jnp.float32),
        # transform.LayerNorm
        "gamma": jnp.ones((1, hidden_size), jnp.float32),
        "beta": jnp.zeros((1, hidden_size), jnp.float32),
        # decoder: Linear(H, V).weight.t() -> (H, V); bias zeros(V)
        "w2": jax.random.uniform(k2, (hidden_size, v_target_size),
                                 jnp.float32, -scale, scale),
        "b2": jnp.zeros((1, v_target_size), jnp.float32),
    }


def _reference(x, p):
    h = jnp.einsum("bsh,hk->bsk", x, p["w1"]) + p["b1"][0]
    h = 0.5 * h * (1.0 + jax.lax.erf(h / jnp.sqrt(2.0)))
    mean = jnp.mean(h, axis=-1, keepdims=True)
    var = jnp.mean((h - mean) ** 2, axis=-1, keepdims=True)
    h = (h - mean) * jax.lax.rsqrt(var + LN_EPS)
    h = h * p["gamma"][0] + p["beta"][0]
    return jnp.einsum("bsh,hv->bsv", h, p["w2"]) + p["b2"][0]


if __name__ == "__main__":
    # Small, module-consistent shapes: batch=2, seq=8, hidden=32, v_target=64.
    B, S, H, V = 2, 8, 32, 64
    key = jax.random.PRNGKey(0)
    kx, kp = jax.random.split(key)

    x = jax.random.normal(kx, (B, S, H), jnp.float32)
    params = init_params(kp, H, V)

    v_logits = bert_visual_prediction_head(x, params)
    v_logits = jax.block_until_ready(v_logits)

    ref = _reference(x, params)
    assert v_logits.shape == (B, S, V)
    # bf16 matmuls with f32 accumulation vs. full-f32 reference.
    assert jnp.allclose(v_logits, ref, atol=2e-2, rtol=2e-2), (
        float(jnp.max(jnp.abs(v_logits - ref))))

    print("KERNEL_OK")
</pallas_src>

<mosaic_0001>
module attributes {stable_mosaic.version = 11 : i64} {
  func.func @_head_kernel(%arg0: i32, %arg1: memref<16x32xf32, #tpu.memory_space<vmem>>, %arg2: memref<32x32xbf16, #tpu.memory_space<vmem>>, %arg3: memref<1x32xf32, #tpu.memory_space<vmem>>, %arg4: memref<1x32xf32, #tpu.memory_space<vmem>>, %arg5: memref<1x32xf32, #tpu.memory_space<vmem>>, %arg6: memref<32x128xbf16, #tpu.memory_space<vmem>>, %arg7: memref<1x128xf32, #tpu.memory_space<vmem>>, %arg8: memref<16x128xf32, #tpu.memory_space<vmem>>) attributes {dimension_semantics = [#tpu.dimension_semantics<parallel>], iteration_bounds = array<i64: 1>, scalar_prefetch = 0 : i64, scratch_operands = 0 : i64, tpu.core_type = #tpu.core_type<tc>, window_params = [{transform_indices = @transform_0, window_bounds = array<i64: 16, 32>}, {pipeline_mode = #tpu.pipeline_mode<synchronous>, transform_indices = @transform_1, window_bounds = array<i64: 32, 32>}, {pipeline_mode = #tpu.pipeline_mode<synchronous>, transform_indices = @transform_2, window_bounds = array<i64: 1, 32>}, {pipeline_mode = #tpu.pipeline_mode<synchronous>, transform_indices = @transform_3, window_bounds = array<i64: 1, 32>}, {pipeline_mode = #tpu.pipeline_mode<synchronous>, transform_indices = @transform_4, window_bounds = array<i64: 1, 32>}, {pipeline_mode = #tpu.pipeline_mode<synchronous>, transform_indices = @transform_5, window_bounds = array<i64: 32, 128>}, {pipeline_mode = #tpu.pipeline_mode<synchronous>, transform_indices = @transform_6, window_bounds = array<i64: 1, 128>}, {transform_indices = @transform_7, window_bounds = array<i64: 16, 128>}]} {
    %c0 = arith.constant 0 : index
    %c0_0 = arith.constant 0 : index
    %0 = vector.load %arg1[%c0, %c0_0] : memref<16x32xf32, #tpu.memory_space<vmem>>, vector<16x32xf32>
    %1 = arith.truncf %0 : vector<16x32xf32> to vector<16x32xbf16>
    %c0_1 = arith.constant 0 : index
    %c0_2 = arith.constant 0 : index
    %2 = vector.load %arg2[%c0_1, %c0_2] : memref<32x32xbf16, #tpu.memory_space<vmem>>, vector<32x32xbf16>
    %cst = arith.constant dense<0.000000e+00> : vector<16x32xf32>
    %3 = tpu.matmul %1, %2, %cst {dimension_numbers = #tpu.dot_dimension_numbers<[1], [0], [0], [1], [0, 0, 1, 1], [], []>} : vector<16x32xbf16>, vector<32x32xbf16>, vector<16x32xf32> -> vector<16x32xf32>
    %c0_3 = arith.constant 0 : index
    %c0_4 = arith.constant 0 : index
    %4 = vector.load %arg3[%c0_3, %c0_4] : memref<1x32xf32, #tpu.memory_space<vmem>>, vector<1x32xf32>
    %5 = vector.broadcast %4 : vector<1x32xf32> to vector<16x32xf32>
    %6 = arith.addf %3, %5 : vector<16x32xf32>
    %cst_5 = arith.constant 5.000000e-01 : f32
    %7 = vector.broadcast %cst_5 : f32 to vector<16x32xf32>
    %8 = arith.mulf %7, %6 : vector<16x32xf32>
    %cst_6 = arith.constant 2.000000e+00 : f32
    %9 = math.sqrt %cst_6 : f32
    %cst_7 = arith.constant 1.000000e+00 : f32
    %10 = arith.divf %cst_7, %9 : f32
    %11 = vector.broadcast %10 : f32 to vector<16x32xf32>
    %12 = arith.mulf %6, %11 : vector<16x32xf32>
    %13 = math.erf %12 : vector<16x32xf32>
    %cst_8 = arith.constant 1.000000e+00 : f32
    %14 = vector.broadcast %cst_8 : f32 to vector<16x32xf32>
    %15 = arith.addf %14, %13 : vector<16x32xf32>
    %16 = arith.mulf %8, %15 : vector<16x32xf32>
    %cst_9 = arith.constant dense<0.000000e+00> : vector<16xf32>
    %17 = vector.multi_reduction <add>, %16, %cst_9 [1] : vector<16x32xf32> to vector<16xf32>
    %18 = vector.shape_cast %17 : vector<16xf32> to vector<16x1xf32>
    %cst_10 = arith.constant 3.200000e+01 : f32
    %19 = vector.broadcast %cst_10 : f32 to vector<16x1xf32>
    %20 = arith.divf %18, %19 : vector<16x1xf32>
    %21 = vector.broadcast %20 : vector<16x1xf32> to vector<16x32xf32>
    %22 = arith.subf %16, %21 : vector<16x32xf32>
    %23 = arith.mulf %22, %22 : vector<16x32xf32>
    %cst_11 = arith.constant dense<0.000000e+00> : vector<16xf32>
    %24 = vector.multi_reduction <add>, %23, %cst_11 [1] : vector<16x32xf32> to vector<16xf32>
    %25 = vector.shape_cast %24 : vector<16xf32> to vector<16x1xf32>
    %cst_12 = arith.constant 3.200000e+01 : f32
    %26 = vector.broadcast %cst_12 : f32 to vector<16x1xf32>
    %27 = arith.divf %25, %26 : vector<16x1xf32>
    %cst_13 = arith.constant 9.99999996E-13 : f32
    %28 = vector.broadcast %cst_13 : f32 to vector<16x1xf32>
    %29 = arith.addf %27, %28 : vector<16x1xf32>
    %30 = math.rsqrt %29 : vector<16x1xf32>
    %31 = vector.broadcast %30 : vector<16x1xf32> to vector<16x32xf32>
    %32 = arith.mulf %22, %31 : vector<16x32xf32>
    %c0_14 = arith.constant 0 : index
    %c0_15 = arith.constant 0 : index
    %33 = vector.load %arg4[%c0_14, %c0_15] : memref<1x32xf32, #tpu.memory_space<vmem>>, vector<1x32xf32>
    %34 = vector.broadcast %33 : vector<1x32xf32> to vector<16x32xf32>
    %35 = arith.mulf %32, %34 : vector<16x32xf32>
    %c0_16 = arith.constant 0 : index
    %c0_17 = arith.constant 0 : index
    %36 = vector.load %arg5[%c0_16, %c0_17] : memref<1x32xf32, #tpu.memory_space<vmem>>, vector<1x32xf32>
    %37 = vector.broadcast %36 : vector<1x32xf32> to vector<16x32xf32>
    %38 = arith.addf %35, %37 : vector<16x32xf32>
    %39 = arith.truncf %38 : vector<16x32xf32> to vector<16x32xbf16>
    %c0_18 = arith.constant 0 : index
    %c0_19 = arith.constant 0 : index
    %40 = vector.load %arg6[%c0_18, %c0_19] : memref<32x128xbf16, #tpu.memory_space<vmem>>, vector<32x128xbf16>
    %cst_20 = arith.constant dense<0.000000e+00> : vector<16x128xf32>
    %41 = tpu.matmul %39, %40, %cst_20 {dimension_numbers = #tpu.dot_dimension_numbers<[1], [0], [0], [1], [0, 0, 1, 1], [], []>} : vector<16x32xbf16>, vector<32x128xbf16>, vector<16x128xf32> -> vector<16x128xf32>
    %c0_21 = arith.constant 0 : index
    %c0_22 = arith.constant 0 : index
    %42 = vector.load %arg7[%c0_21, %c0_22] : memref<1x128xf32, #tpu.memory_space<vmem>>, vector<1x128xf32>
    %43 = vector.broadcast %42 : vector<1x128xf32> to vector<16x128xf32>
    %44 = arith.addf %41, %43 : vector<16x128xf32>
    %c0_23 = arith.constant 0 : index
    %c0_24 = arith.constant 0 : index
    %45 = vector.load %arg8[%c0_23, %c0_24] : memref<16x128xf32, #tpu.memory_space<vmem>>, vector<16x128xf32>
    tpu.vector_store %arg8[%c0_23, %c0_24], %44 {strides = array<i32>} : memref<16x128xf32, #tpu.memory_space<vmem>>, vector<16x128xf32>,
    return
  }
  func.func @transform_0(%arg0: i32) -> (i32, i32) {
    %c0_i32 = arith.constant 0 : i32
    %c0_i32_0 = arith.constant 0 : i32
    return %arg0, %c0_i32 : i32, i32
  }
  func.func @transform_1(%arg0: i32) -> (i32, i32) {
    %c0_i32 = arith.constant 0 : i32
    %c0_i32_0 = arith.constant 0 : i32
    %c0_i32_1 = arith.constant 0 : i32
    return %c0_i32, %c0_i32_0 : i32, i32
  }
  func.func @transform_2(%arg0: i32) -> (i32, i32) {
    %c0_i32 = arith.constant 0 : i32
    %c0_i32_0 = arith.constant 0 : i32
    %c0_i32_1 = arith.constant 0 : i32
    return %c0_i32, %c0_i32_0 : i32, i32
  }
  func.func @transform_3(%arg0: i32) -> (i32, i32) {
    %c0_i32 = arith.constant 0 : i32
    %c0_i32_0 = arith.constant 0 : i32
    %c0_i32_1 = arith.constant 0 : i32
    return %c0_i32, %c0_i32_0 : i32, i32
  }
  func.func @transform_4(%arg0: i32) -> (i32, i32) {
    %c0_i32 = arith.constant 0 : i32
    %c0_i32_0 = arith.constant 0 : i32
    %c0_i32_1 = arith.constant 0 : i32
    return %c0_i32, %c0_i32_0 : i32, i32
  }
  func.func @transform_5(%arg0: i32) -> (i32, i32) {
    %c0_i32 = arith.constant 0 : i32
    %c0_i32_0 = arith.constant 0 : i32
    %c0_i32_1 = arith.constant 0 : i32
    return %c0_i32, %c0_i32_0 : i32, i32
  }
  func.func @transform_6(%arg0: i32) -> (i32, i32) {
    %c0_i32 = arith.constant 0 : i32
    %c0_i32_0 = arith.constant 0 : i32
    %c0_i32_1 = arith.constant 0 : i32
    return %c0_i32, %c0_i32_0 : i32, i32
  }
  func.func @transform_7(%arg0: i32) -> (i32, i32) {
    %c0_i32 = arith.constant 0 : i32
    %c0_i32_0 = arith.constant 0 : i32
    return %arg0, %c0_i32 : i32, i32
  }
}

</mosaic_0001>

<llo_original>
// kernel: tpu_custom_call.1
$region0: #{tpu_custom_call.1}
  #allocation0 [shape = 'u32[]', space=smem, size = 0x4, offset = 0x4, fixed_abs, tag = 'smem constant byte address 0x4 - core index']
  #allocation1 [shape = 'u32[144,128]{1,0:T(1,128)}', space=vmem, size = 0x12000, scoped, tag = 'internal scratch']
  %s0 = inlined_call_operand.hbm [shape: f32[16,32], index: 0, kind: input, shape index: {}]
  %s1 = inlined_call_operand.hbm [shape: bf16[32,32], index: 1, kind: input, shape index: {}]
  %s2 = inlined_call_operand.vmem [shape: f32[1,32], index: 2, kind: input, shape index: {}]
  %s3 = inlined_call_operand.vmem [shape: f32[1,32], index: 3, kind: input, shape index: {}]
  %s4 = inlined_call_operand.vmem [shape: f32[1,32], index: 4, kind: input, shape index: {}]
  %s5 = inlined_call_operand.hbm [shape: bf16[32,128], index: 5, kind: input, shape index: {}]
  %s6 = inlined_call_operand.vmem [shape: f32[1,128], index: 6, kind: input, shape index: {}]
  %s7 = inlined_call_operand.hbm [shape: f32[16,128], index: 7, kind: output, shape index: {}]
  %s8 = sld [smem:[#allocation0]]
  $region50: #{tpu_custom_call.1} parent=0
    _
  %s10 = ssub.s32 1, %s8
  %s11 = scalar_select 0, %s10, %s8
  $region1: #{tpu_custom_call.1} parent=0
    #allocation2 [shape = 'u8[8192]{0}', space=vmem, size = 0x2000, scoped, tag = 'input window, operand 0, single buffered']
    #allocation3 [shape = 's32[1]{0}', space=sflag, size = 0x4, scoped, tag = 'scoped memory for tpu_custom_call.1']
    #allocation4 [shape = 's32[1]{0}', space=sflag, size = 0x4, scoped, tag = 'scoped memory for tpu_custom_call.1']
    #allocation5 [shape = 'u8[8192]{0}', space=vmem, size = 0x2000, scoped, tag = 'input window, operand 1, single buffered']
    #allocation6 [shape = 's32[1]{0}', space=sflag, size = 0x4, scoped, tag = 'scoped memory for tpu_custom_call.1']
    #allocation7 [shape = 'u8[8192]{0}', space=vmem, size = 0x2000, scoped, tag = 'input window, operand 5, single buffered']
    #allocation8 [shape = 'u8[8192]{0}', space=vmem, size = 0x2000, scoped, tag = 'output window, operand 0, single buffered']
    %12 = vsyncpa [#allocation3], 0
    %13 = vsyncpa [#allocation6], 0
    %14 = vsyncpa [#allocation4], 0
    // Predicated region
    $region2: #{tpu_custom_call.1} parent=1 // pred_check
      _
    $region3: #{tpu_custom_call.1} parent=1 // pred_check_branch
      %16 = sbr.rel (0) target = $region5
    $region4: #{tpu_custom_call.1} parent=1 // pred_region
      %s18 = ssub.s32 256, 256
      %19 = vsyncadd [#allocation3], %s18
      %s20 = sshll.u32 [#allocation2], 4
      %s21 = int_to_ptr.vmem [resolvable:$true] %s20
      %26 = dma.hbm_to_vmem [thread:$0]  %s0, 256, %s21, [#allocation3], 128, 128, 8
    $region5: #{tpu_custom_call.1} parent=1 // pred_fallthru
      _
    // Predicated region
    $region6: #{tpu_custom_call.1} parent=1 // pred_check
      _
    $region7: #{tpu_custom_call.1} parent=1 // pred_check_branch
      %28 = sbr.rel (0) target = $region9
    $region8: #{tpu_custom_call.1} parent=1 // pred_region
      %s30 = ssub.s32 256, 256
      %31 = vsyncadd [#allocation6], %s30
      %s32 = sshll.u32 [#allocation5], 4
      %s33 = int_to_ptr.vmem [resolvable:$true] %s32
      %38 = dma.hbm_to_vmem [thread:$0]  %s1, 256, %s33, [#allocation6], 64, 64, 4
    $region9: #{tpu_custom_call.1} parent=1 // pred_fallthru
      _
    // Predicated region
    $region10: #{tpu_custom_call.1} parent=1 // pred_check
      _
    $region11: #{tpu_custom_call.1} parent=1 // pred_check_branch
      %40 = sbr.rel (0) target = $region13
    $region12: #{tpu_custom_call.1} parent=1 // pred_region
      _
    $region13: #{tpu_custom_call.1} parent=1 // pred_fallthru
      _
    // Predicated region
    $region14: #{tpu_custom_call.1} parent=1 // pred_check
      _
    $region15: #{tpu_custom_call.1} parent=1 // pred_check_branch
      %42 = sbr.rel (0) target = $region17
    $region16: #{tpu_custom_call.1} parent=1 // pred_region
      _
    $region17: #{tpu_custom_call.1} parent=1 // pred_fallthru
      _
    // Predicated region
    $region18: #{tpu_custom_call.1} parent=1 // pred_check
      _
    $region19: #{tpu_custom_call.1} parent=1 // pred_check_branch
      %44 = sbr.rel (0) target = $region21
    $region20: #{tpu_custom_call.1} parent=1 // pred_region
      _
    $region21: #{tpu_custom_call.1} parent=1 // pred_fallthru
      _
    // Predicated region
    $region22: #{tpu_custom_call.1} parent=1 // pred_check
      _
    $region23: #{tpu_custom_call.1} parent=1 // pred_check_branch
      %46 = sbr.rel (0) target = $region25
    $region24: #{tpu_custom_call.1} parent=1 // pred_region
      %s48 = ssub.s32 256, 256
      %49 = vsyncadd [#allocation6], %s48
      %s50 = sshll.u32 [#allocation7], 4
      %s51 = int_to_ptr.vmem [resolvable:$true] %s50
      %56 = dma.hbm_to_vmem [thread:$0]  %s5, 256, %s51, [#allocation6], 64, 64, 4
    $region25: #{tpu_custom_call.1} parent=1 // pred_fallthru
      _
    // Predicated region
    $region26: #{tpu_custom_call.1} parent=1 // pred_check
      _
    $region27: #{tpu_custom_call.1} parent=1 // pred_check_branch
      %58 = sbr.rel (0) target = $region29
    $region28: #{tpu_custom_call.1} parent=1 // pred_region
      _
    $region29: #{tpu_custom_call.1} parent=1 // pred_fallthru
      _
    // Predicated region
    $region30: #{tpu_custom_call.1} parent=1 // pred_check
      _
    $region31: #{tpu_custom_call.1} parent=1 // pred_check_branch
      %60 = sbr.rel (0) target = $region33
    $region32: #{tpu_custom_call.1} parent=1 // pred_region
      %61 = dma.done [#allocation3], 256
    $region33: #{tpu_custom_call.1} parent=1 // pred_fallthru
      _
    // Predicated region
    $region34: #{tpu_custom_call.1} parent=1 // pred_check
      _
    $region35: #{tpu_custom_call.1} parent=1 // pred_check_branch
      %63 = sbr.rel (0) target = $region37
    $region36: #{tpu_custom_call.1} parent=1 // pred_region
      %64 = dma.done [#allocation6], 256
    $region37: #{tpu_custom_call.1} parent=1 // pred_fallthru
      _
    // Predicated region
    $region38: #{tpu_custom_call.1} parent=1 // pred_check
      _
    $region39: #{tpu_custom_call.1} parent=1 // pred_check_branch
      %66 = sbr.rel (0) target = $region41
    $region40: #{tpu_custom_call.1} parent=1 // pred_region
      %67 = dma.done [#allocation6], 256
    $region41: #{tpu_custom_call.1} parent=1 // pred_fallthru
      _
    %v69 = vld [vmem:[#allocation2] sm:$0xff]
    %v70 = vld [vmem:[#allocation2 + $0x8] sm:$0xff]
    %v71 = vpack.c.bf16 %v70, %v69
    %v72 = vld [vmem:[#allocation5] sm:$0xf]
    %v73 = vld [vmem:[#allocation5 + $0x4] sm:$0xf]
    %v74 = vld [vmem:[#allocation5 + $0x8] sm:$0xf]
    %v75 = vld [vmem:[#allocation5 + $0xc] sm:$0xf]
    %v76 = vld [vmem:[%s2] sm:$0x1]
    %v78 = vlaneseq
    %v79 = vshrl.u32 %v78, 7
    %v80 = vsub.s32 0, %v79
    %v81 = vrot.slane %v76, %v80
    %v87 = vunpack.c.l.b16 %v72
    %v88 = vunpack.c.l.b16 %v73
    %v89 = vunpack.c.l.b16 %v74
    %v90 = vunpack.c.l.b16 %v75
    %v91 = vpack.c.b16 %v88, %v87
    %v92 = vpack.c.b16 %v90, %v89
    %vm95 = vcmask 261120
    %v97 = vsel %vm95, %v71, 0
    %99 = vmatprep.subr.bf16.mxu0 0
    %100 = vmatpush1.bf16.msra.mxu0 0
    %101 = vmatprep.subr.bf16.mxu0 0
    %102 = vmatpush1.bf16.msra.mxu0 0
    %103 = vmatprep.subr.bf16.mxu0 0
    %104 = vmatpush1.bf16.msra.mxu0 0
    %105 = vmatprep.subr.bf16.mxu0 0
    %106 = vmatpush1.bf16.msra.mxu0 0
    %107 = vmatprep.subr.bf16.mxu0 0
    %108 = vmatpush1.bf16.msra.mxu0 0
    %109 = vmatprep.subr.bf16.mxu0 0
    %110 = vmatpush1.bf16.msra.mxu0 0
    %111 = vmatprep.subr.bf16.mxu0 0
    %112 = vmatpush1.bf16.msra.mxu0 %v92
    %113 = vmatprep.subr.bf16.mxu0 0
    %114 = vmatpush1.bf16.msra.mxu0 %v91
    %115 = vmatprep.subr.bf16.mxu0 0
    %116 = vmatpush2.bf16.msra.mxu0 0
    %117 = vmatprep.subr.bf16.mxu0 0
    %118 = vmatpush2.bf16.msra.mxu0 0
    %119 = vmatprep.subr.bf16.mxu0 0
    %120 = vmatpush2.bf16.msra.mxu0 0
    %121 = vmatprep.subr.bf16.mxu0 0
    %122 = vmatpush2.bf16.msra.mxu0 0
    %123 = vmatprep.subr.bf16.mxu0 0
    %124 = vmatpush2.bf16.msra.mxu0 0
    %125 = vmatprep.subr.bf16.mxu0 0
    %126 = vmatpush2.bf16.msra.mxu0 0
    %127 = vmatprep.subr.bf16.mxu0 0
    %128 = vmatpush2.bf16.msra.mxu0 0
    %129 = vmatprep.subr.bf16.mxu0 0
    %130 = vmatpush2.bf16.msra.mxu0 0
    %131 = vmatprep.mubr.bf16.mxu0 0
    %132 = vmatmul.mubr.bf16.gmra.mxu0 %v97
    %v133 = vpop.f32.mrf.mxu0
    %v134 = vadd.f32 %v81, %v133
    %v135 = vpop.f32.mrf.mxu0
    %v136 = vpop.f32.mrf.mxu0
    %v137 = vadd.f32 %v81, %v136
    %v138 = vpop.f32.mrf.mxu0
    %139 = vdwg.mxu0
    %v140 = vmul.f32 %v134, 0.5
    %v141 = vmul.f32 %v137, 0.5
    %v142 = vmul.f32 %v134, 0.70710677
    %v143 = vmul.f32 %v137, 0.70710677
    %v144 = verf.f32.pop %v142
    %v145 = verf.f32.pop %v143
    %v146 = vadd.f32 %v144, 1.0
    %v147 = vadd.f32 %v145, 1.0
    %v148 = vmul.f32 %v140, %v146
    %v149 = vmul.f32 %v141, %v147
    %v150 = vsel %vm95, %v148, 0.0
    %151 = vadd.xlane.f32.xlu0 %v150
    %v152 = vpop.xlane.xlu0 %151
    %v153 = vsel %vm95, %v149, 0.0
    %154 = vadd.xlane.f32.xlu0 %v153
    %v155 = vpop.xlane.xlu0 %154
    %v156 = vrcp.pop 32.0
    %v157 = vmul.f32 %v152, %v156
    %v158 = vmul.f32 %v155, %v156
    %v159 = vsub.f32 %v148, %v157
    %v160 = vsub.f32 %v149, %v158
    %v161 = vmul.f32 %v159, %v159
    %v162 = vmul.f32 %v160, %v160
    %v163 = vsel %vm95, %v161, 0.0
    %164 = vadd.xlane.f32.xlu0 %v163
    %v165 = vpop.xlane.xlu0 %164
    %v166 = vsel %vm95, %v162, 0.0
    %167 = vadd.xlane.f32.xlu0 %v166
    %v168 = vpop.xlane.xlu0 %167
    %v169 = vmul.f32 %v165, %v156
    %v170 = vmul.f32 %v168, %v156
    %v171 = vadd.f32 %v169, 1e-12
    %v172 = vadd.f32 %v170, 1e-12
    %v173 = vrsqrt.pop %v171
    %v174 = vrsqrt.pop %v172
    %v175 = vmul.f32 %v159, %v173
    %v176 = vmul.f32 %v160, %v174
    %v177 = vld [vmem:[%s3] sm:$0x1]
    %v179 = vlaneseq
    %v180 = vshrl.u32 %v179, 7
    %v181 = vsub.s32 0, %v180
    %v182 = vrot.slane %v177, %v181
    %v184 = vmul.f32 %v175, %v182
    %v185 = vmul.f32 %v176, %v182
    %v186 = vld [vmem:[%s4] sm:$0x1]
    %v188 = vlaneseq
    %v189 = vshrl.u32 %v188, 7
    %v190 = vsub.s32 0, %v189
    %v191 = vrot.slane %v186, %v190
    %v193 = vadd.f32 %v184, %v191
    %v194 = vadd.f32 %v185, %v191
    %v195 = vpack.c.bf16 %v194, %v193
    %v196 = vld [vmem:[#allocation7] sm:$0xf]
    %v197 = vld [vmem:[#allocation7 + $0x4] sm:$0xf]
    %v198 = vld [vmem:[#allocation7 + $0x8] sm:$0xf]
    %v199 = vld [vmem:[#allocation7 + $0xc] sm:$0xf]
    %v200 = vld [vmem:[%s6] sm:$0x1]
    %v202 = vlaneseq
    %v203 = vshrl.u32 %v202, 7
    %v204 = vsub.s32 0, %v203
    %v205 = vrot.slane %v200, %v204
    %v211 = vunpack.c.l.b16 %v196
    %v212 = vunpack.c.l.b16 %v197
    %v213 = vunpack.c.l.b16 %v198
    %v214 = vunpack.c.l.b16 %v199
    %v215 = vpack.c.b16 %v212, %v211
    %v216 = vpack.c.b16 %v214, %v213
    %v220 = vsel %vm95, %v195, 0
    %222 = vmatprep.subr.bf16.mxu0 0
    %223 = vmatpush1.bf16.msra.mxu0 0
    %224 = vmatprep.subr.bf16.mxu0 0
    %225 = vmatpush1.bf16.msra.mxu0 0
    %226 = vmatprep.subr.bf16.mxu0 0
    %227 = vmatpush1.bf16.msra.mxu0 0
    %228 = vmatprep.subr.bf16.mxu0 0
    %229 = vmatpush1.bf16.msra.mxu0 0
    %230 = vmatprep.subr.bf16.mxu0 0
    %231 = vmatpush1.bf16.msra.mxu0 0
    %232 = vmatprep.subr.bf16.mxu0 0
    %233 = vmatpush1.bf16.msra.mxu0 0
    %234 = vmatprep.subr.bf16.mxu0 0
    %235 = vmatpush1.bf16.msra.mxu0 %v216
    %236 = vmatprep.subr.bf16.mxu0 0
    %237 = vmatpush1.bf16.msra.mxu0 %v215
    %238 = vmatprep.subr.bf16.mxu0 0
    %239 = vmatpush2.bf16.msra.mxu0 0
    %240 = vmatprep.subr.bf16.mxu0 0
    %241 = vmatpush2.bf16.msra.mxu0 0
    %242 = vmatprep.subr.bf16.mxu0 0
    %243 = vmatpush2.bf16.msra.mxu0 0
    %244 = vmatprep.subr.bf16.mxu0 0
    %245 = vmatpush2.bf16.msra.mxu0 0
    %246 = vmatprep.subr.bf16.mxu0 0
    %247 = vmatpush2.bf16.msra.mxu0 0
    %248 = vmatprep.subr.bf16.mxu0 0
    %249 = vmatpush2.bf16.msra.mxu0 0
    %250 = vmatprep.subr.bf16.mxu0 0
    %251 = vmatpush2.bf16.msra.mxu0 0
    %252 = vmatprep.subr.bf16.mxu0 0
    %253 = vmatpush2.bf16.msra.mxu0 0
    %254 = vmatprep.mubr.bf16.mxu0 0
    %255 = vmatmul.mubr.bf16.gmra.mxu0 %v220
    %v256 = vpop.f32.mrf.mxu0
    %v257 = vadd.f32 %v205, %v256
    %v258 = vpop.f32.mrf.mxu0
    %v259 = vpop.f32.mrf.mxu0
    %v260 = vadd.f32 %v205, %v259
    %v261 = vpop.f32.mrf.mxu0
    %262 = vdwg.mxu0
    %263 = vst [vmem:[#allocation8] sm:$0xff] %v257
    %264 = vst [vmem:[#allocation8 + $0x8] sm:$0xff] %v260
    // Predicated region
    $region42: #{tpu_custom_call.1} parent=1 // pred_check
      _
    $region43: #{tpu_custom_call.1} parent=1 // pred_check_branch
      %266 = sbr.rel (0) target = $region45
    $region44: #{tpu_custom_call.1} parent=1 // pred_region
      %s268 = ssub.s32 256, 256
      %269 = vsyncadd [#allocation4], %s268
      %s270 = sshll.u32 [#allocation8], 4
      %s271 = int_to_ptr.vmem [resolvable:$true] %s270
      %276 = dma.vmem_to_hbm [thread:$0]  %s271, 256, %s7, [#allocation4], 128, 128, 8
    $region45: #{tpu_custom_call.1} parent=1 // pred_fallthru
      _
    // Predicated region
    $region46: #{tpu_custom_call.1} parent=1 // pred_check
      _
    $region47: #{tpu_custom_call.1} parent=1 // pred_check_branch
      %278 = sbr.rel (0) target = $region49
    $region48: #{tpu_custom_call.1} parent=1 // pred_region
      %279 = dma.done [#allocation4], 256
    $region49: #{tpu_custom_call.1} parent=1 // pred_fallthru
      _
    %280 = vsyncpa [#allocation3], 1
    %281 = vsyncpa [#allocation6], 1
    %282 = vsyncpa [#allocation4], 1

</llo_original>
